<compile_context>
chip_gen: v5e
topology: v5e:2x2
jax: 0.10.0
libtpu: 0.0.40
codegen_flags: <defaults>
</compile_context>

<pallas_src>
import math

import jax
import jax.numpy as jnp
import numpy as np
from jax import lax
from jax.experimental import pallas as pl
from jax.experimental.pallas import tpu as pltpu


# -----------------------------------------------------------------------------
# DCT coefficients (identical to initDctCoeff in the torch module).
# -----------------------------------------------------------------------------
def _dct_matrix(blocksize: int) -> np.ndarray:
    dm = np.zeros((blocksize, blocksize), dtype=np.float64)
    for i in range(blocksize):
        for j in range(blocksize):
            c = math.sqrt(1.0 / blocksize) if i == 0 else math.sqrt(2.0 / blocksize)
            dm[i, j] = c * math.cos(math.pi * (j + 0.5) * i / blocksize)
    return dm  # DCT; iDCT = dm.T


_VMEM_LIMIT = 32 * 1024 * 1024     # explicit; fine on v5e/v6e (128 MiB) and v7x (64 MiB)
_TILE_BYTES = 2 * 1024 * 1024      # ~2 MiB x tiles: past the measured HBM-roofline knee
# Pinned matmul precision: single-pass bf16 (DEFAULT) cannot meet the
# rtol=1e-3 check against the float64 reference; full-precision f32 passes
# and the kernel is still memory-bound-ish at <=64 FLOP/byte intensity.
_PREC = lax.Precision.HIGHEST


# -----------------------------------------------------------------------------
# Kernels
# -----------------------------------------------------------------------------
def _dct_folded_kernel(x_ref, w_ref, b_ref, o_ref):
    # x_ref: (TMF, L) with L = blocksize*H (lane-dense); w_ref: (L, L); b_ref: (1, L).
    # Scale (255) is folded into w_ref, shift (-128) is the precomputed bias row.
    x = x_ref[...].astype(jnp.float32)     # upcast in-kernel; no extra HBM pass
    y = jnp.dot(x, w_ref[...], precision=_PREC, preferred_element_type=jnp.float32)
    o_ref[...] = (y + b_ref[...]).astype(o_ref.dtype)


def _dct_tiled_kernel(x_ref, l_ref, r_ref, o_ref):
    # x_ref/o_ref: (TM, TH) DMA tiles; l_ref: (KL, KL) blockdiag(DCT);
    # r_ref: (KR, KR) blockdiag(iDCT).  Operators are decoupled from the DMA
    # tile: we sweep (KL, KR) sub-tiles with static (unrolled) loops so the
    # MXU work per element is bounded by 2*(KL+KR) regardless of tile size.
    tm, th = x_ref.shape
    kl = l_ref.shape[0]
    kr = r_ref.shape[0]
    lmat = l_ref[...]
    rmat = r_ref[...]
    for s in range(tm // kl):
        for c in range(th // kr):
            xs = x_ref[s * kl:(s + 1) * kl, c * kr:(c + 1) * kr].astype(jnp.float32)
            xs = xs * 255.0 - 128.0                         # cheap VPU prologue
            t = jnp.dot(lmat, xs, precision=_PREC, preferred_element_type=jnp.float32)
            y = jnp.dot(t, rmat, precision=_PREC, preferred_element_type=jnp.float32)
            o_ref[s * kl:(s + 1) * kl, c * kr:(c + 1) * kr] = y.astype(o_ref.dtype)


# -----------------------------------------------------------------------------
# Tile-selection helpers
# -----------------------------------------------------------------------------
def _pick_tile(dim: int, step: int, target: int) -> int:
    """Largest multiple of `step` that divides `dim` and is <= max(step, target)."""
    t = min(dim, max(step, (target // step) * step))
    t = max(step, (t // step) * step)
    while dim % t != 0:
        t -= step
    return t


# -----------------------------------------------------------------------------
# Wrapper
# -----------------------------------------------------------------------------
def dct_layer_forward(inputs: jax.Array, blocksize: int) -> jax.Array:
    """Pallas equivalent of dctLayer.forward (softRound is the identity)."""
    b, c, w, h = inputs.shape
    assert w % blocksize == 0 and h % blocksize == 0
    # Force a floating output: DCT outputs span ~+/-1000 and must not be
    # wrapped back to an integer image dtype.
    out_dtype = inputs.dtype if jnp.issubdtype(inputs.dtype, jnp.floating) else jnp.float32
    m = b * c * w
    dm = _dct_matrix(blocksize)

    lanes = blocksize * h
    if lanes <= 512:
        # ---------- folded path: single lane-dense matmul + bias ----------
        # Groups of `blocksize` rows fold into the lane axis, so the whole
        # two-sided per-block transform is one right-matmul with
        #   Op = kron(iDCT, kron(I_{H/bs}, iDCT)).
        mf = m // blocksize
        x3 = inputs.reshape(mf, lanes)                      # free row-major reshape

        idct = dm.T
        core = np.kron(idct, np.kron(np.eye(h // blocksize), idct))
        w_op = jnp.asarray((255.0 * core).astype(np.float32))
        bias = jnp.asarray((-128.0 * core.sum(axis=0, keepdims=True)).astype(np.float32))

        # Row tile: ~2 MiB lane-dense slabs, but keep >=2 grid steps so v7x's
        # two TensorCores both get work and DMA overlaps compute.
        tmf = max(8, (_TILE_BYTES // (lanes * 4)) // 8 * 8)
        if mf > 8:
            tmf = min(tmf, max(8, ((-(-mf // 2)) + 7) // 8 * 8))
        tmf = min(tmf, mf)
        grid = (pl.cdiv(mf, tmf),)
        # NOTE: if `lanes` is not a multiple of 128 the (correct) output
        # stores are lane-masked; pad upstream if that case matters for perf.

        out3 = pl.pallas_call(
            _dct_folded_kernel,
            out_shape=jax.ShapeDtypeStruct((mf, lanes), out_dtype),
            grid=grid,
            in_specs=[
                pl.BlockSpec((tmf, lanes), lambda i: (i, 0)),
                pl.BlockSpec((lanes, lanes), lambda i: (0, 0)),   # constant block
                pl.BlockSpec((1, lanes), lambda i: (0, 0)),       # constant block
            ],
            out_specs=pl.BlockSpec((tmf, lanes), lambda i: (i, 0)),
            compiler_params=pltpu.CompilerParams(
                dimension_semantics=("parallel",),
                vmem_limit_bytes=_VMEM_LIMIT,
            ),
        )(x3, w_op, bias)
        return out3.reshape(b, c, w, h)

    # ---------- tiled two-sided path: fixed-width block-diagonal operators ----------
    x2 = inputs.reshape(m, h)                               # free row-major reshape

    kr = _pick_tile(h, blocksize, 128)                      # right operator width (<=128)
    th = _pick_tile(h, kr, 512)                             # lane width of the DMA tile
    if th != h and th % 128 != 0:
        th = h                                              # keep (.,128) block rule happy
    kl = _pick_tile(m, blocksize, 128)                      # left operator width (<=128)

    nc = th // kr
    rows_cap = max(1, 32 // nc) * kl                        # bound in-kernel unroll (~32 sub-tiles)
    rows_mem = max(kl, (_TILE_BYTES // (th * 4)) // kl * kl)  # ~2 MiB x tile
    tm_target = min(rows_cap, rows_mem)
    if m >= 2 * kl:
        tm_target = min(tm_target, m // 2)                  # >=2 parallel steps (v7x megacore)
    tm = _pick_tile(m, kl, tm_target)

    l_op = jnp.asarray(np.kron(np.eye(kl // blocksize), dm).astype(np.float32))
    r_op = jnp.asarray(np.kron(np.eye(kr // blocksize), dm.T).astype(np.float32))

    out2 = pl.pallas_call(
        _dct_tiled_kernel,
        out_shape=jax.ShapeDtypeStruct((m, h), out_dtype),
        grid=(m // tm, h // th),
        in_specs=[
            pl.BlockSpec((tm, th), lambda i, j: (i, j)),
            pl.BlockSpec((kl, kl), lambda i, j: (0, 0)),    # constant block
            pl.BlockSpec((kr, kr), lambda i, j: (0, 0)),    # constant block
        ],
        out_specs=pl.BlockSpec((tm, th), lambda i, j: (i, j)),
        compiler_params=pltpu.CompilerParams(
            dimension_semantics=("parallel", "parallel"),
            vmem_limit_bytes=_VMEM_LIMIT,
        ),
    )(x2, l_op, r_op)
    return out2.reshape(b, c, w, h)


# -----------------------------------------------------------------------------
# float64 numpy reference (mirrors the torch forward exactly)
# -----------------------------------------------------------------------------
def _reference_forward_np(inputs_np: np.ndarray, blocksize: int) -> np.ndarray:
    dm = _dct_matrix(blocksize)
    dct, idct = dm, dm.T
    b, c, w, h = inputs_np.shape
    nw, nh = w // blocksize, h // blocksize
    x = inputs_np.astype(np.float64) * 255.0 - 128.0
    x = x.reshape(b, c, nw, blocksize, nh, blocksize)
    x = x.transpose(0, 1, 2, 4, 3, 5)
    x = np.einsum("ip,bcnmpq,qj->bcnmij", dct, x, idct)
    x = x.transpose(0, 1, 2, 4, 3, 5)
    return x.reshape(b, c, w, h)


if __name__ == "__main__":
    blocksize = 8

    key = jax.random.PRNGKey(0)
    k1, k2 = jax.random.split(key)

    # Small case (module's toy shape): exercises the lane-folded path
    # (lanes=128, 2-step parallel grid).
    x_small = jax.random.uniform(k1, (2, 4, 16, 16), dtype=jnp.float32)
    out_small = jax.block_until_ready(dct_layer_forward(x_small, blocksize))
    ref_small = _reference_forward_np(np.asarray(x_small), blocksize)
    np.testing.assert_allclose(np.asarray(out_small), ref_small, rtol=1e-3, atol=1e-1)

    # Larger plane: exercises the tiled two-sided path with decoupled
    # 128-wide block-diagonal operators and a 2-step parallel grid.
    x_big = jax.random.uniform(k2, (1, 2, 128, 128), dtype=jnp.float32)
    out_big = jax.block_until_ready(dct_layer_forward(x_big, blocksize))
    ref_big = _reference_forward_np(np.asarray(x_big), blocksize)
    np.testing.assert_allclose(np.asarray(out_big), ref_big, rtol=1e-3, atol=1e-1)

    print("KERNEL_OK")
</pallas_src>

<mosaic_0001>
module attributes {stable_mosaic.version = 11 : i64} {
  func.func @_dct_folded_kernel(%arg0: i32, %arg1: memref<8x128xf32, #tpu.memory_space<vmem>>, %arg2: memref<128x128xf32, #tpu.memory_space<vmem>>, %arg3: memref<1x128xf32, #tpu.memory_space<vmem>>, %arg4: memref<8x128xf32, #tpu.memory_space<vmem>>) attributes {dimension_semantics = [#tpu.dimension_semantics<parallel>], iteration_bounds = array<i64: 2>, scalar_prefetch = 0 : i64, scratch_operands = 0 : i64, tpu.core_type = #tpu.core_type<tc>, window_params = [{transform_indices = @transform_0, window_bounds = array<i64: 8, 128>}, {pipeline_mode = #tpu.pipeline_mode<synchronous>, transform_indices = @transform_1, window_bounds = array<i64: 128, 128>}, {pipeline_mode = #tpu.pipeline_mode<synchronous>, transform_indices = @transform_2, window_bounds = array<i64: 1, 128>}, {transform_indices = @transform_3, window_bounds = array<i64: 8, 128>}]} {
    %c0 = arith.constant 0 : index
    %c0_0 = arith.constant 0 : index
    %0 = vector.load %arg1[%c0, %c0_0] : memref<8x128xf32, #tpu.memory_space<vmem>>, vector<8x128xf32>
    %c0_1 = arith.constant 0 : index
    %c0_2 = arith.constant 0 : index
    %1 = vector.load %arg2[%c0_1, %c0_2] : memref<128x128xf32, #tpu.memory_space<vmem>>, vector<128x128xf32>
    %cst = arith.constant dense<0.000000e+00> : vector<8x128xf32>
    %2 = tpu.matmul %0, %1, %cst {dimension_numbers = #tpu.dot_dimension_numbers<[1], [0], [0], [1], [0, 0, 1, 1], [], []>, precision = #tpu.contract_precision<fp32>} : vector<8x128xf32>, vector<128x128xf32>, vector<8x128xf32> -> vector<8x128xf32>
    %c0_3 = arith.constant 0 : index
    %c0_4 = arith.constant 0 : index
    %3 = vector.load %arg3[%c0_3, %c0_4] : memref<1x128xf32, #tpu.memory_space<vmem>>, vector<1x128xf32>
    %4 = vector.broadcast %3 : vector<1x128xf32> to vector<8x128xf32>
    %5 = arith.addf %2, %4 : vector<8x128xf32>
    %c0_5 = arith.constant 0 : index
    %c0_6 = arith.constant 0 : index
    %6 = vector.load %arg4[%c0_5, %c0_6] : memref<8x128xf32, #tpu.memory_space<vmem>>, vector<8x128xf32>
    tpu.vector_store %arg4[%c0_5, %c0_6], %5 {strides = array<i32>} : memref<8x128xf32, #tpu.memory_space<vmem>>, vector<8x128xf32>,
    return
  }
  func.func @transform_0(%arg0: i32) -> (i32, i32) {
    %c0_i32 = arith.constant 0 : i32
    %c0_i32_0 = arith.constant 0 : i32
    return %arg0, %c0_i32 : i32, i32
  }
  func.func @transform_1(%arg0: i32) -> (i32, i32) {
    %c0_i32 = arith.constant 0 : i32
    %c0_i32_0 = arith.constant 0 : i32
    %c0_i32_1 = arith.constant 0 : i32
    return %c0_i32, %c0_i32_0 : i32, i32
  }
  func.func @transform_2(%arg0: i32) -> (i32, i32) {
    %c0_i32 = arith.constant 0 : i32
    %c0_i32_0 = arith.constant 0 : i32
    %c0_i32_1 = arith.constant 0 : i32
    return %c0_i32, %c0_i32_0 : i32, i32
  }
  func.func @transform_3(%arg0: i32) -> (i32, i32) {
    %c0_i32 = arith.constant 0 : i32
    %c0_i32_0 = arith.constant 0 : i32
    return %arg0, %c0_i32 : i32, i32
  }
}

</mosaic_0001>

<llo_original>
// kernel: tpu_custom_call.1
$region0: #{tpu_custom_call.1}
  #allocation0 [shape = 'u32[]', space=smem, size = 0x4, offset = 0x4, fixed_abs, tag = 'smem constant byte address 0x4 - core index']
  #allocation1 [shape = 'u32[72,128]{1,0:T(1,128)}', space=vmem, size = 0x9000, scoped, tag = 'internal scratch']
  %s0 = inlined_call_operand.hbm [shape: f32[16,128], index: 0, kind: input, shape index: {}]
  %s1 = inlined_call_operand.hbm [shape: f32[128,128], index: 1, kind: input, shape index: {}]
  %s2 = inlined_call_operand.vmem [shape: f32[1,128], index: 2, kind: input, shape index: {}]
  %s3 = inlined_call_operand.hbm [shape: f32[16,128], index: 3, kind: output, shape index: {}]
  %s4 = sld [smem:[#allocation0]]
  $region53: #{tpu_custom_call.1} parent=0
    _
  %s6 = ssub.s32 1, %s4
  %s7 = scalar_select 0, %s6, %s4
  $region1: #{tpu_custom_call.1} parent=0
    #allocation2 [shape = 'u8[8192]{0}', space=vmem, size = 0x2000, scoped, tag = 'input window, operand 0']
    #allocation3 [shape = 's32[2]{0}', space=sflag, size = 0x8, scoped, tag = 'scoped memory for tpu_custom_call.1']
    #allocation4 [shape = 's32[2]{0}', space=sflag, size = 0x8, scoped, tag = 'scoped memory for tpu_custom_call.1']
    #allocation5 [shape = 'u8[65536]{0}', space=vmem, size = 0x10000, scoped, tag = 'input window, operand 1, single buffered']
    #allocation6 [shape = 's32[1]{0}', space=sflag, size = 0x4, scoped, tag = 'scoped memory for tpu_custom_call.1']
    #allocation7 [shape = 'u8[8192]{0}', space=vmem, size = 0x2000, scoped, tag = 'output window, operand 0']
    %8 = vsyncpa [#allocation3], 0
    %s9 = scalar_lea.sflag [#allocation3], 1
    %10 = vsyncpa %s9, 0
    %11 = vsyncpa [#allocation6], 0
    %12 = vsyncpa [#allocation4], 0
    %s13 = scalar_lea.sflag [#allocation4], 1
    %14 = vsyncpa %s13, 0
    loop: start=0, step=1, limit=4
    $region2: #{tpu_custom_call.1} parent=1 // loop_pre_header
      _
    $region3: #{tpu_custom_call.1} parent=1 // loop_header
      %s16 = sphi 0, %s20
      %p17 = scmp.ge.s32.totalorder %s16, 4
      %s26 = sphi 0, %s28
      %s29 = sphi 0, %s26
      %s30 = sphi 0, %s29
      %s46 = sphi 0, %s30
      %s50 = sphi 0, %s50
      %s52 = sphi 0, %s50
      %s53 = sphi 0, %s52
      %s67 = sphi 0, %s53
      %s71 = sphi 0, %s71
      %s73 = sphi 0, %s71
      %s74 = sphi 0, %s73
      %s88 = sphi 0, %s74
      %s94 = sphi 0, %s96
      %s97 = sphi 0, %s94
      %s98 = sphi 0, %s97
      %s114 = sphi 0, %s98
    $region4: #{tpu_custom_call.1} parent=1 // loop_header_branch
      %19 = sbr.rel (%p17) target = $region8
    $region5: #{tpu_custom_call.1} parent=1 // loop_body
      %s21 = ssub.s32 %s16, 1
      %s22 = ssub.s32 %s16, 2
      %s23 = sadd.s32 %s16, 1
      %s24 = ssub.s32 %s16, %s23
      %p25 = scmp.eq.s32.totalorder %s24, 0
      %s27 = sadd.s32 %s26, 1
      %s28 = scalar_select %p25, %s26, %s27
      %p31 = pneg %p25
      %p32 = scmp.eq.s32.totalorder %s16, 1
      %p33 = por %p31, %p32
      %p34 = scmp.ne.s32.totalorder %s26, %s29
      %p35 = scmp.eq.s32.totalorder %s16, 0
      %p36 = por %p34, %p35
      %p37 = scmp.ne.s32.totalorder %s26, %s29
      %p38 = scmp.eq.s32.totalorder %s21, 1
      %p39 = por %p37, %p38
      %p40 = scmp.ne.s32.totalorder %s29, %s30
      %p41 = scmp.eq.s32.totalorder %s21, 0
      %p42 = por %p40, %p41
      %p43 = scmp.ne.s32.totalorder %s29, %s30
      %p44 = scmp.eq.s32.totalorder %s22, 1
      %p45 = por %p43, %p44
      %p47 = scmp.ne.s32.totalorder %s30, %s46
      %p48 = scmp.eq.s32.totalorder %s22, 0
      %p49 = por %p47, %p48
      %s51 = sadd.s32 %s50, 1
      %p54 = scmp.eq.s32.totalorder %s16, 1
      %p55 = scmp.ne.s32.totalorder %s50, %s52
      %p56 = scmp.eq.s32.totalorder %s16, 0
      %p57 = por %p55, %p56
      %p58 = scmp.ne.s32.totalorder %s50, %s52
      %p59 = scmp.eq.s32.totalorder %s21, 1
      %p60 = por %p58, %p59
      %p61 = scmp.ne.s32.totalorder %s52, %s53
      %p62 = scmp.eq.s32.totalorder %s21, 0
      %p63 = por %p61, %p62
      %p64 = scmp.ne.s32.totalorder %s52, %s53
      %p65 = scmp.eq.s32.totalorder %s22, 1
      %p66 = por %p64, %p65
      %p68 = scmp.ne.s32.totalorder %s53, %s67
      %p69 = scmp.eq.s32.totalorder %s22, 0
      %p70 = por %p68, %p69
      %s72 = sadd.s32 %s71, 1
      %p75 = scmp.eq.s32.totalorder %s16, 1
      %p76 = scmp.ne.s32.totalorder %s71, %s73
      %p77 = scmp.eq.s32.totalorder %s16, 0
      %p78 = por %p76, %p77
      %p79 = scmp.ne.s32.totalorder %s71, %s73
      %p80 = scmp.eq.s32.totalorder %s21, 1
      %p81 = por %p79, %p80
      %p82 = scmp.ne.s32.totalorder %s73, %s74
      %p83 = scmp.eq.s32.totalorder %s21, 0
      %p84 = por %p82, %p83
      %p85 = scmp.ne.s32.totalorder %s73, %s74
      %p86 = scmp.eq.s32.totalorder %s22, 1
      %p87 = por %p85, %p86
      %p89 = scmp.ne.s32.totalorder %s74, %s88
      %p90 = scmp.eq.s32.totalorder %s22, 0
      %p91 = por %p89, %p90
      %s92 = ssub.s32 %s16, %s23
      %p93 = scmp.eq.s32.totalorder %s92, 0
      %s95 = sadd.s32 %s94, 1
      %s96 = scalar_select %p93, %s94, %s95
      %p99 = pneg %p93
      %p100 = scmp.eq.s32.totalorder %s16, 1
      %p101 = por %p99, %p100
      %p102 = scmp.ne.s32.totalorder %s94, %s97
      %p103 = scmp.eq.s32.totalorder %s16, 0
      %p104 = por %p102, %p103
      %p105 = scmp.ne.s32.totalorder %s94, %s97
      %p106 = scmp.eq.s32.totalorder %s21, 1
      %p107 = por %p105, %p106
      %p108 = scmp.ne.s32.totalorder %s97, %s98
      %p109 = scmp.eq.s32.totalorder %s21, 0
      %p110 = por %p108, %p109
      %p111 = scmp.ne.s32.totalorder %s97, %s98
      %p112 = scmp.eq.s32.totalorder %s22, 1
      %p113 = por %p111, %p112
      %p115 = scmp.ne.s32.totalorder %s98, %s114
      %p116 = scmp.eq.s32.totalorder %s22, 0
      %p117 = por %p115, %p116
      %p118 = scmp.le.s32.totalorder 1, %s16
      %p119 = scmp.lt.s32.totalorder %s16, 3
      %p120 = pnand %p118, %p119
      %p121 = pneg %p120
      // Predicated region
      $region9: #{tpu_custom_call.1} parent=5 // pred_check
        _
      $region10: #{tpu_custom_call.1} parent=5 // pred_check_branch
        %123 = sbr.rel (%p120) target = $region12
      $region11: #{tpu_custom_call.1} parent=5 // pred_region
        %s124 = ssub.s32 %s16, 1
        // Predicated region
        $region13: #{tpu_custom_call.1} parent=11 // pred_check
          %p125 = pneg %p63
        $region14: #{tpu_custom_call.1} parent=11 // pred_check_branch
          %127 = sbr.rel (%p125) target = $region16
        $region15: #{tpu_custom_call.1} parent=11 // pred_region
          %129 = vsyncadd [#allocation6], 0
          %s130 = sshll.u32 %s1, 4
          %s131 = int_to_ptr.hbm [resolvable:$true] %s130
          %s132 = sshll.u32 [#allocation5], 4
          %s133 = int_to_ptr.vmem [resolvable:$true] %s132
          %138 = dma.hbm_to_vmem [thread:$0]  %s131, 2048, %s133, [#allocation6], 128, 128, 8
        $region16: #{tpu_custom_call.1} parent=11 // pred_fallthru
          _
        // Predicated region
        $region17: #{tpu_custom_call.1} parent=11 // pred_check
          %p139 = pneg %p84
        $region18: #{tpu_custom_call.1} parent=11 // pred_check_branch
          %141 = sbr.rel (%p139) target = $region20
        $region19: #{tpu_custom_call.1} parent=11 // pred_region
          _
        $region20: #{tpu_custom_call.1} parent=11 // pred_fallthru
          _
      $region12: #{tpu_custom_call.1} parent=5 // pred_fallthru
        _
      %p142 = scmp.lt.s32.totalorder %s16, 2
      // Predicated region
      $region21: #{tpu_custom_call.1} parent=5 // pred_check
        %p143 = pneg %p142
      $region22: #{tpu_custom_call.1} parent=5 // pred_check_branch
        %145 = sbr.rel (%p143) target = $region24
      $region23: #{tpu_custom_call.1} parent=5 // pred_region
        // Predicated region
        $region25: #{tpu_custom_call.1} parent=23 // pred_check
          %p146 = pneg %p36
        $region26: #{tpu_custom_call.1} parent=23 // pred_check_branch
          %148 = sbr.rel (%p146) target = $region28
        $region27: #{tpu_custom_call.1} parent=23 // pred_region
          %s149 = sand.u32 %s26, 1
          %s150 = scalar_lea.sflag [#allocation3], %s149
          %s151 = sand.u32 %s26, 1
          %s152 = smul.addr %s151, 8
          %s153 = scalar_lea.vmem [#allocation2], %s152
          %155 = vsyncadd %s150, 0
          %s156 = smul.addr %s16, 8
          %s157 = scalar_lea.hbm %s0, %s156
          %s159 = sshll.u32 %s157, 4
          %s160 = int_to_ptr.hbm [resolvable:$true] %s159
          %s161 = sshll.u32 %s153, 4
          %s162 = int_to_ptr.vmem [resolvable:$true] %s161
          %164 = dma.hbm_to_vmem [thread:$0]  %s160, 128, %s162, %s150
        $region28: #{tpu_custom_call.1} parent=23 // pred_fallthru
          _
      $region24: #{tpu_custom_call.1} parent=5 // pred_fallthru
        _
      %p165 = scmp.le.s32.totalorder 1, %s16
      %p166 = scmp.lt.s32.totalorder %s16, 3
      %p167 = pnand %p165, %p166
      %p168 = pneg %p167
      // Predicated region
      $region29: #{tpu_custom_call.1} parent=5 // pred_check
        _
      $region30: #{tpu_custom_call.1} parent=5 // pred_check_branch
        %170 = sbr.rel (%p167) target = $region32
      $region31: #{tpu_custom_call.1} parent=5 // pred_region
        %s171 = ssub.s32 %s16, 1
        %s172 = sand.u32 %s29, 1
        %s173 = scalar_lea.sflag [#allocation3], %s172
        %s174 = sand.u32 %s29, 1
        %s175 = smul.addr %s174, 8
        %s176 = scalar_lea.vmem [#allocation2], %s175
        // Predicated region
        $region33: #{tpu_custom_call.1} parent=31 // pred_check
          %p177 = pneg %p42
        $region34: #{tpu_custom_call.1} parent=31 // pred_check_branch
          %179 = sbr.rel (%p177) target = $region36
        $region35: #{tpu_custom_call.1} parent=31 // pred_region
          %181 = dma.done %s173, 128
        $region36: #{tpu_custom_call.1} parent=31 // pred_fallthru
          _
        // Predicated region
        $region37: #{tpu_custom_call.1} parent=31 // pred_check
          %p182 = pneg %p63
        $region38: #{tpu_custom_call.1} parent=31 // pred_check_branch
          %184 = sbr.rel (%p182) target = $region40
        $region39: #{tpu_custom_call.1} parent=31 // pred_region
          %186 = dma.done [#allocation6], 2048
        $region40: #{tpu_custom_call.1} parent=31 // pred_fallthru
          _
        %s187 = sand.u32 %s29, 1
        %s188 = scalar_lea.sflag [#allocation3], %s187
        %s189 = sand.u32 %s29, 1
        %s190 = smul.addr %s189, 8
        %s191 = scalar_lea.vmem [#allocation2], %s190
        %p192 = pneg %p42
        %p193 = pneg %p39
        %p194 = pneg %p63
        %p195 = pneg %p60
        %p196 = pneg %p84
        %p197 = pneg %p81
        %p198 = pneg %p110
        %p199 = pneg %p107
        %s200 = sand.u32 %s97, 1
        %s201 = scalar_lea.sflag [#allocation4], %s200
        %s202 = sand.u32 %s97, 1
        %s203 = smul.addr %s202, 8
        %s204 = scalar_lea.vmem [#allocation7], %s203
        %v205 = vld [vmem:[%s176] sm:$0xff]
        %v206 = vld [vmem:[#allocation5] sm:$0xff]
        %v207 = vld [vmem:[#allocation5 + $0x8] sm:$0xff]
        %v208 = vld [vmem:[#allocation5 + $0x10] sm:$0xff]
        %v209 = vld [vmem:[#allocation5 + $0x18] sm:$0xff]
        %v210 = vld [vmem:[#allocation5 + $0x20] sm:$0xff]
        %v211 = vld [vmem:[#allocation5 + $0x28] sm:$0xff]
        %v212 = vld [vmem:[#allocation5 + $0x30] sm:$0xff]
        %v213 = vld [vmem:[#allocation5 + $0x38] sm:$0xff]
        %v214 = vld [vmem:[#allocation5 + $0x40] sm:$0xff]
        %v215 = vld [vmem:[#allocation5 + $0x48] sm:$0xff]
        %v216 = vld [vmem:[#allocation5 + $0x50] sm:$0xff]
        %v217 = vld [vmem:[#allocation5 + $0x58] sm:$0xff]
        %v218 = vld [vmem:[#allocation5 + $0x60] sm:$0xff]
        %v219 = vld [vmem:[#allocation5 + $0x68] sm:$0xff]
        %v220 = vld [vmem:[#allocation5 + $0x70] sm:$0xff]
        %v221 = vld [vmem:[#allocation5 + $0x78] sm:$0xff]
        %v222 = vld [vmem:[%s2] sm:$0x1]
        %v224 = vperm.slane %v222, 0
        %v226 = vand.u32 %v221, 4294901760
        %227 = vmatpush.msra.mxu0 %v226
        %v228 = vand.u32 %v220, 4294901760
        %229 = vmatpush.msra.mxu0 %v228
        %v230 = vand.u32 %v219, 4294901760
        %231 = vmatpush.msra.mxu0 %v230
        %v232 = vand.u32 %v218, 4294901760
        %233 = vmatpush.msra.mxu0 %v232
        %v234 = vand.u32 %v217, 4294901760
        %235 = vmatpush.msra.mxu0 %v234
        %v236 = vand.u32 %v216, 4294901760
        %237 = vmatpush.msra.mxu0 %v236
        %v238 = vand.u32 %v215, 4294901760
        %239 = vmatpush.msra.mxu0 %v238
        %v240 = vand.u32 %v214, 4294901760
        %241 = vmatpush.msra.mxu0 %v240
        %v242 = vand.u32 %v213, 4294901760
        %243 = vmatpush.msra.mxu0 %v242
        %v244 = vand.u32 %v212, 4294901760
        %245 = vmatpush.msra.mxu0 %v244
        %v246 = vand.u32 %v211, 4294901760
        %247 = vmatpush.msra.mxu0 %v246
        %v248 = vand.u32 %v210, 4294901760
        %249 = vmatpush.msra.mxu0 %v248
        %v250 = vand.u32 %v209, 4294901760
        %251 = vmatpush.msra.mxu0 %v250
        %v252 = vand.u32 %v208, 4294901760
        %253 = vmatpush.msra.mxu0 %v252
        %v254 = vand.u32 %v207, 4294901760
        %255 = vmatpush.msra.mxu0 %v254
        %v256 = vand.u32 %v206, 4294901760
        %257 = vmatpush.msra.mxu0 %v256
        %v258 = vand.u32 %v205, 4294901760
        %v259 = vsub.f32 %v205, %v258
        %v260 = vand.u32 %v259, 4294901760
        %v261 = vsub.f32 %v259, %v260
        %v262 = vand.u32 %v261, 4294901760
        %263 = vmatmul.f32.gmra.mxu0 %v262
        %v264 = vpop.f32.mrf.mxu0
        %v265 = vadd.f32 %v224, %v264
        %266 = vdwg.mxu0
        %v267 = vand.u32 %v221, 4294901760
        %v268 = vsub.f32 %v221, %v267
        %v269 = vand.u32 %v268, 4294901760
        %v270 = vsub.f32 %v268, %v269
        %v271 = vand.u32 %v270, 4294901760
        %272 = vmatpush.msra.mxu0 %v271
        %v273 = vand.u32 %v220, 4294901760
        %v274 = vsub.f32 %v220, %v273
        %v275 = vand.u32 %v274, 4294901760
        %v276 = vsub.f32 %v274, %v275
        %v277 = vand.u32 %v276, 4294901760
        %278 = vmatpush.msra.mxu0 %v277
        %v279 = vand.u32 %v219, 4294901760
        %v280 = vsub.f32 %v219, %v279
        %v281 = vand.u32 %v280, 4294901760
        %v282 = vsub.f32 %v280, %v281
        %v283 = vand.u32 %v282, 4294901760
        %284 = vmatpush.msra.mxu0 %v283
        %v285 = vand.u32 %v218, 4294901760
        %v286 = vsub.f32 %v218, %v285
        %v287 = vand.u32 %v286, 4294901760
        %v288 = vsub.f32 %v286, %v287
        %v289 = vand.u32 %v288, 4294901760
        %290 = vmatpush.msra.mxu0 %v289
        %v291 = vand.u32 %v217, 4294901760
        %v292 = vsub.f32 %v217, %v291
        %v293 = vand.u32 %v292, 4294901760
        %v294 = vsub.f32 %v292, %v293
        %v295 = vand.u32 %v294, 4294901760
        %296 = vmatpush.msra.mxu0 %v295
        %v297 = vand.u32 %v216, 4294901760
        %v298 = vsub.f32 %v216, %v297
        %v299 = vand.u32 %v298, 4294901760
        %v300 = vsub.f32 %v298, %v299
        %v301 = vand.u32 %v300, 4294901760
        %302 = vmatpush.msra.mxu0 %v301
        %v303 = vand.u32 %v215, 4294901760
        %v304 = vsub.f32 %v215, %v303
        %v305 = vand.u32 %v304, 4294901760
        %v306 = vsub.f32 %v304, %v305
        %v307 = vand.u32 %v306, 4294901760
        %308 = vmatpush.msra.mxu0 %v307
        %v309 = vand.u32 %v214, 4294901760
        %v310 = vsub.f32 %v214, %v309
        %v311 = vand.u32 %v310, 4294901760
        %v312 = vsub.f32 %v310, %v311
        %v313 = vand.u32 %v312, 4294901760
        %314 = vmatpush.msra.mxu0 %v313
        %v315 = vand.u32 %v213, 4294901760
        %v316 = vsub.f32 %v213, %v315
        %v317 = vand.u32 %v316, 4294901760
        %v318 = vsub.f32 %v316, %v317
        %v319 = vand.u32 %v318, 4294901760
        %320 = vmatpush.msra.mxu0 %v319
        %v321 = vand.u32 %v212, 4294901760
        %v322 = vsub.f32 %v212, %v321
        %v323 = vand.u32 %v322, 4294901760
        %v324 = vsub.f32 %v322, %v323
        %v325 = vand.u32 %v324, 4294901760
        %326 = vmatpush.msra.mxu0 %v325
        %v327 = vand.u32 %v211, 4294901760
        %v328 = vsub.f32 %v211, %v327
        %v329 = vand.u32 %v328, 4294901760
        %v330 = vsub.f32 %v328, %v329
        %v331 = vand.u32 %v330, 4294901760
        %332 = vmatpush.msra.mxu0 %v331
        %v333 = vand.u32 %v210, 4294901760
        %v334 = vsub.f32 %v210, %v333
        %v335 = vand.u32 %v334, 4294901760
        %v336 = vsub.f32 %v334, %v335
        %v337 = vand.u32 %v336, 4294901760
        %338 = vmatpush.msra.mxu0 %v337
        %v339 = vand.u32 %v209, 4294901760
        %v340 = vsub.f32 %v209, %v339
        %v341 = vand.u32 %v340, 4294901760
        %v342 = vsub.f32 %v340, %v341
        %v343 = vand.u32 %v342, 4294901760
        %344 = vmatpush.msra.mxu0 %v343
        %v345 = vand.u32 %v208, 4294901760
        %v346 = vsub.f32 %v208, %v345
        %v347 = vand.u32 %v346, 4294901760
        %v348 = vsub.f32 %v346, %v347
        %v349 = vand.u32 %v348, 4294901760
        %350 = vmatpush.msra.mxu0 %v349
        %v351 = vand.u32 %v207, 4294901760
        %v352 = vsub.f32 %v207, %v351
        %v353 = vand.u32 %v352, 4294901760
        %v354 = vsub.f32 %v352, %v353
        %v355 = vand.u32 %v354, 4294901760
        %356 = vmatpush.msra.mxu0 %v355
        %v357 = vand.u32 %v206, 4294901760
        %v358 = vsub.f32 %v206, %v357
        %v359 = vand.u32 %v358, 4294901760
        %v360 = vsub.f32 %v358, %v359
        %v361 = vand.u32 %v360, 4294901760
        %362 = vmatpush.msra.mxu0 %v361
        %v363 = vand.u32 %v205, 4294901760
        %364 = vmatmul.f32.gmra.mxu0 %v363
        %v365 = vpop.f32.mrf.mxu0
        %v366 = vadd.f32 %v265, %v365
        %367 = vdwg.mxu0
        %v368 = vand.u32 %v221, 4294901760
        %v369 = vsub.f32 %v221, %v368
        %370 = vmatpush.msra.mxu0 %v369
        %v371 = vand.u32 %v220, 4294901760
        %v372 = vsub.f32 %v220, %v371
        %373 = vmatpush.msra.mxu0 %v372
        %v374 = vand.u32 %v219, 4294901760
        %v375 = vsub.f32 %v219, %v374
        %376 = vmatpush.msra.mxu0 %v375
        %v377 = vand.u32 %v218, 4294901760
        %v378 = vsub.f32 %v218, %v377
        %379 = vmatpush.msra.mxu0 %v378
        %v380 = vand.u32 %v217, 4294901760
        %v381 = vsub.f32 %v217, %v380
        %382 = vmatpush.msra.mxu0 %v381
        %v383 = vand.u32 %v216, 4294901760
        %v384 = vsub.f32 %v216, %v383
        %385 = vmatpush.msra.mxu0 %v384
        %v386 = vand.u32 %v215, 4294901760
        %v387 = vsub.f32 %v215, %v386
        %388 = vmatpush.msra.mxu0 %v387
        %v389 = vand.u32 %v214, 4294901760
        %v390 = vsub.f32 %v214, %v389
        %391 = vmatpush.msra.mxu0 %v390
        %v392 = vand.u32 %v213, 4294901760
        %v393 = vsub.f32 %v213, %v392
        %394 = vmatpush.msra.mxu0 %v393
        %v395 = vand.u32 %v212, 4294901760
        %v396 = vsub.f32 %v212, %v395
        %397 = vmatpush.msra.mxu0 %v396
        %v398 = vand.u32 %v211, 4294901760
        %v399 = vsub.f32 %v211, %v398
        %400 = vmatpush.msra.mxu0 %v399
        %v401 = vand.u32 %v210, 4294901760
        %v402 = vsub.f32 %v210, %v401
        %403 = vmatpush.msra.mxu0 %v402
        %v404 = vand.u32 %v209, 4294901760
        %v405 = vsub.f32 %v209, %v404
        %406 = vmatpush.msra.mxu0 %v405
        %v407 = vand.u32 %v208, 4294901760
        %v408 = vsub.f32 %v208, %v407
        %409 = vmatpush.msra.mxu0 %v408
        %v410 = vand.u32 %v207, 4294901760
        %v411 = vsub.f32 %v207, %v410
        %412 = vmatpush.msra.mxu0 %v411
        %v413 = vand.u32 %v206, 4294901760
        %v414 = vsub.f32 %v206, %v413
        %415 = vmatpush.msra.mxu0 %v414
        %v416 = vand.u32 %v205, 4294901760
        %v417 = vsub.f32 %v205, %v416
        %418 = vmatmul.f32.gmra.mxu0 %v417
        %v419 = vpop.f32.mrf.mxu0
        %v420 = vadd.f32 %v366, %v419
        %421 = vdwg.mxu0
        %v422 = vand.u32 %v221, 4294901760
        %423 = vmatpush.msra.mxu0 %v422
        %v424 = vand.u32 %v220, 4294901760
        %425 = vmatpush.msra.mxu0 %v424
        %v426 = vand.u32 %v219, 4294901760
        %427 = vmatpush.msra.mxu0 %v426
        %v428 = vand.u32 %v218, 4294901760
        %429 = vmatpush.msra.mxu0 %v428
        %v430 = vand.u32 %v217, 4294901760
        %431 = vmatpush.msra.mxu0 %v430
        %v432 = vand.u32 %v216, 4294901760
        %433 = vmatpush.msra.mxu0 %v432
        %v434 = vand.u32 %v215, 4294901760
        %435 = vmatpush.msra.mxu0 %v434
        %v436 = vand.u32 %v214, 4294901760
        %437 = vmatpush.msra.mxu0 %v436
        %v438 = vand.u32 %v213, 4294901760
        %439 = vmatpush.msra.mxu0 %v438
        %v440 = vand.u32 %v212, 4294901760
        %441 = vmatpush.msra.mxu0 %v440
        %v442 = vand.u32 %v211, 4294901760
        %443 = vmatpush.msra.mxu0 %v442
        %v444 = vand.u32 %v210, 4294901760
        %445 = vmatpush.msra.mxu0 %v444
        %v446 = vand.u32 %v209, 4294901760
        %447 = vmatpush.msra.mxu0 %v446
        %v448 = vand.u32 %v208, 4294901760
        %449 = vmatpush.msra.mxu0 %v448
        %v450 = vand.u32 %v207, 4294901760
        %451 = vmatpush.msra.mxu0 %v450
        %v452 = vand.u32 %v206, 4294901760
        %453 = vmatpush.msra.mxu0 %v452
        %v454 = vand.u32 %v205, 4294901760
        %v455 = vsub.f32 %v205, %v454
        %v456 = vand.u32 %v455, 4294901760
        %457 = vmatmul.f32.gmra.mxu0 %v456
        %v458 = vpop.f32.mrf.mxu0
        %v459 = vadd.f32 %v420, %v458
        %460 = vdwg.mxu0
        %v461 = vand.u32 %v221, 4294901760
        %v462 = vsub.f32 %v221, %v461
        %v463 = vand.u32 %v462, 4294901760
        %464 = vmatpush.msra.mxu0 %v463
        %v465 = vand.u32 %v220, 4294901760
        %v466 = vsub.f32 %v220, %v465
        %v467 = vand.u32 %v466, 4294901760
        %468 = vmatpush.msra.mxu0 %v467
        %v469 = vand.u32 %v219, 4294901760
        %v470 = vsub.f32 %v219, %v469
        %v471 = vand.u32 %v470, 4294901760
        %472 = vmatpush.msra.mxu0 %v471
        %v473 = vand.u32 %v218, 4294901760
        %v474 = vsub.f32 %v218, %v473
        %v475 = vand.u32 %v474, 4294901760
        %476 = vmatpush.msra.mxu0 %v475
        %v477 = vand.u32 %v217, 4294901760
        %v478 = vsub.f32 %v217, %v477
        %v479 = vand.u32 %v478, 4294901760
        %480 = vmatpush.msra.mxu0 %v479
        %v481 = vand.u32 %v216, 4294901760
        %v482 = vsub.f32 %v216, %v481
        %v483 = vand.u32 %v482, 4294901760
        %484 = vmatpush.msra.mxu0 %v483
        %v485 = vand.u32 %v215, 4294901760
        %v486 = vsub.f32 %v215, %v485
        %v487 = vand.u32 %v486, 4294901760
        %488 = vmatpush.msra.mxu0 %v487
        %v489 = vand.u32 %v214, 4294901760
        %v490 = vsub.f32 %v214, %v489
        %v491 = vand.u32 %v490, 4294901760
        %492 = vmatpush.msra.mxu0 %v491
        %v493 = vand.u32 %v213, 4294901760
        %v494 = vsub.f32 %v213, %v493
        %v495 = vand.u32 %v494, 4294901760
        %496 = vmatpush.msra.mxu0 %v495
        %v497 = vand.u32 %v212, 4294901760
        %v498 = vsub.f32 %v212, %v497
        %v499 = vand.u32 %v498, 4294901760
        %500 = vmatpush.msra.mxu0 %v499
        %v501 = vand.u32 %v211, 4294901760
        %v502 = vsub.f32 %v211, %v501
        %v503 = vand.u32 %v502, 4294901760
        %504 = vmatpush.msra.mxu0 %v503
        %v505 = vand.u32 %v210, 4294901760
        %v506 = vsub.f32 %v210, %v505
        %v507 = vand.u32 %v506, 4294901760
        %508 = vmatpush.msra.mxu0 %v507
        %v509 = vand.u32 %v209, 4294901760
        %v510 = vsub.f32 %v209, %v509
        %v511 = vand.u32 %v510, 4294901760
        %512 = vmatpush.msra.mxu0 %v511
        %v513 = vand.u32 %v208, 4294901760
        %v514 = vsub.f32 %v208, %v513
        %v515 = vand.u32 %v514, 4294901760
        %516 = vmatpush.msra.mxu0 %v515
        %v517 = vand.u32 %v207, 4294901760
        %v518 = vsub.f32 %v207, %v517
        %v519 = vand.u32 %v518, 4294901760
        %520 = vmatpush.msra.mxu0 %v519
        %v521 = vand.u32 %v206, 4294901760
        %v522 = vsub.f32 %v206, %v521
        %v523 = vand.u32 %v522, 4294901760
        %524 = vmatpush.msra.mxu0 %v523
        %v525 = vand.u32 %v205, 4294901760
        %526 = vmatmul.f32.gmra.mxu0 %v525
        %v527 = vpop.f32.mrf.mxu0
        %v528 = vadd.f32 %v459, %v527
        %529 = vdwg.mxu0
        %v530 = vand.u32 %v221, 4294901760
        %531 = vmatpush.msra.mxu0 %v530
        %v532 = vand.u32 %v220, 4294901760
        %533 = vmatpush.msra.mxu0 %v532
        %v534 = vand.u32 %v219, 4294901760
        %535 = vmatpush.msra.mxu0 %v534
        %v536 = vand.u32 %v218, 4294901760
        %537 = vmatpush.msra.mxu0 %v536
        %v538 = vand.u32 %v217, 4294901760
        %539 = vmatpush.msra.mxu0 %v538
        %v540 = vand.u32 %v216, 4294901760
        %541 = vmatpush.msra.mxu0 %v540
        %v542 = vand.u32 %v215, 4294901760
        %543 = vmatpush.msra.mxu0 %v542
        %v544 = vand.u32 %v214, 4294901760
        %545 = vmatpush.msra.mxu0 %v544
        %v546 = vand.u32 %v213, 4294901760
        %547 = vmatpush.msra.mxu0 %v546
        %v548 = vand.u32 %v212, 4294901760
        %549 = vmatpush.msra.mxu0 %v548
        %v550 = vand.u32 %v211, 4294901760
        %551 = vmatpush.msra.mxu0 %v550
        %v552 = vand.u32 %v210, 4294901760
        %553 = vmatpush.msra.mxu0 %v552
        %v554 = vand.u32 %v209, 4294901760
        %555 = vmatpush.msra.mxu0 %v554
        %v556 = vand.u32 %v208, 4294901760
        %557 = vmatpush.msra.mxu0 %v556
        %v558 = vand.u32 %v207, 4294901760
        %559 = vmatpush.msra.mxu0 %v558
        %v560 = vand.u32 %v206, 4294901760
        %561 = vmatpush.msra.mxu0 %v560
        %v562 = vand.u32 %v205, 4294901760
        %563 = vmatmul.f32.gmra.mxu0 %v562
        %v564 = vpop.f32.mrf.mxu0
        %v565 = vadd.f32 %v528, %v564
        %566 = vdwg.mxu0
        %567 = vst [vmem:[%s204] sm:$0xff] %v565
        %s568 = sand.u32 %s97, 1
        %s569 = scalar_lea.sflag [#allocation4], %s568
        %s570 = sand.u32 %s97, 1
        %s571 = smul.addr %s570, 8
        %s572 = scalar_lea.vmem [#allocation7], %s571
        // Predicated region
        $region41: #{tpu_custom_call.1} parent=31 // pred_check
          %p573 = pneg %p107
        $region42: #{tpu_custom_call.1} parent=31 // pred_check_branch
          %575 = sbr.rel (%p573) target = $region44
        $region43: #{tpu_custom_call.1} parent=31 // pred_region
          %577 = vsyncadd %s569, 0
          %s578 = smul.addr %s21, 8
          %s579 = scalar_lea.hbm %s3, %s578
          %s581 = sshll.u32 %s572, 4
          %s582 = int_to_ptr.vmem [resolvable:$true] %s581
          %s583 = sshll.u32 %s579, 4
          %s584 = int_to_ptr.hbm [resolvable:$true] %s583
          %586 = dma.vmem_to_hbm [thread:$0]  %s582, 128, %s584, %s569
        $region44: #{tpu_custom_call.1} parent=31 // pred_fallthru
          _
      $region32: #{tpu_custom_call.1} parent=5 // pred_fallthru
        _
      %p587 = scmp.le.s32.totalorder 2, %s16
      // Predicated region
      $region45: #{tpu_custom_call.1} parent=5 // pred_check
        %p588 = pneg %p587
      $region46: #{tpu_custom_call.1} parent=5 // pred_check_branch
        %590 = sbr.rel (%p588) target = $region48
      $region47: #{tpu_custom_call.1} parent=5 // pred_region
        %s591 = ssub.s32 %s16, 2
        // Predicated region
        $region49: #{tpu_custom_call.1} parent=47 // pred_check
          %p592 = pneg %p113
        $region50: #{tpu_custom_call.1} parent=47 // pred_check_branch
          %594 = sbr.rel (%p592) target = $region52
        $region51: #{tpu_custom_call.1} parent=47 // pred_region
          %s595 = sand.u32 %s98, 1
          %s596 = scalar_lea.sflag [#allocation4], %s595
          %s597 = sand.u32 %s98, 1
          %s598 = smul.addr %s597, 8
          %s599 = scalar_lea.vmem [#allocation7], %s598
          %601 = dma.done %s596, 128
        $region52: #{tpu_custom_call.1} parent=47 // pred_fallthru
          _
      $region48: #{tpu_custom_call.1} parent=5 // pred_fallthru
        _
    $region6: #{tpu_custom_call.1} parent=1 // loop_footer
      %s20 = sadd.s32 1, %s16
    $region7: #{tpu_custom_call.1} parent=1 // loop_footer_branch
      %15 = sbr.rel target = $region3
    $region8: #{tpu_custom_call.1} parent=1 // loop_exit
      _
    %602 = vsyncpa [#allocation3], 1
    %s603 = scalar_lea.sflag [#allocation3], 1
    %604 = vsyncpa %s603, 1
    %605 = vsyncpa [#allocation6], 1
    %606 = vsyncpa [#allocation4], 1
    %s607 = scalar_lea.sflag [#allocation4], 1
    %608 = vsyncpa %s607, 1

</llo_original>
